<compile_context>
chip_gen: v6e
topology: v6e:2x2x1
jax: 0.10.0
libtpu: 0.0.40
codegen_flags: <defaults>
</compile_context>

<pallas_src>
import functools
import math

import jax
import jax.numpy as jnp
from jax import lax
from jax.experimental import pallas as pl
from jax.experimental.pallas import tpu as pltpu


def _make_kernel(act_norm, neg_slope, eps):
    def kernel(x_ref, w_ref, b_ref, gamma_ref, beta_ref, o_ref):
        # x_ref: [1, 1, K_pad, Mb]   (im2col patches, lane-dense along Mb)
        # w_ref: [1, Cout_g, K_pad]
        # b/gamma/beta: [1, Cout_g, 1]
        # o_ref: [1, 1, Cout_g, Mb]
        x = x_ref[0, 0]            # [K_pad, Mb]
        w = w_ref[0]               # [Cout_g, K_pad]

        # Single large-K matmul on the MXU; f32 accumulation, native-dtype operands.
        y = jnp.dot(w, x, preferred_element_type=jnp.float32)   # [Cout_g, Mb] f32
        y = y + b_ref[0].astype(jnp.float32)                    # per-channel bias

        if act_norm:
            # GroupNorm over the whole (channels-in-group, spatial) block — one-pass stats.
            inv_n = 1.0 / float(y.shape[0] * y.shape[1])
            mean = jnp.sum(y, keepdims=True) * inv_n             # [1, 1]
            mean_sq = jnp.sum(y * y, keepdims=True) * inv_n      # [1, 1]
            var = mean_sq - mean * mean
            y = (y - mean) * lax.rsqrt(var + eps)
            y = y * gamma_ref[0].astype(jnp.float32) + beta_ref[0].astype(jnp.float32)
            # LeakyReLU(0.2)
            y = jnp.where(y >= 0, y, neg_slope * y)

        o_ref[0, 0] = y.astype(o_ref.dtype)

    return kernel


def group_conv2d(x, weight, bias, gamma, beta, *, kernel_size, stride, padding,
                 groups, act_norm, neg_slope=0.2, eps=1e-5):
    """Forward pass of GroupConv2d. x is NCHW; weight is OIHW (PyTorch conv layout)."""
    N, Cin, H, W = x.shape
    Cout = weight.shape[0]
    if Cin % groups != 0:          # mirrors the PyTorch __init__ fallback
        groups = 1
    if Cout % groups != 0:         # PyTorch's nn.Conv2d would raise here; don't drop channels.
        raise ValueError(f"out_channels={Cout} not divisible by groups={groups}")
    G = groups
    Cin_g = Cin // G
    Cout_g = Cout // G
    KH = KW = kernel_size
    Hp, Wp = H + 2 * padding, W + 2 * padding
    OH = (Hp - KH) // stride + 1
    OW = (Wp - KW) // stride + 1
    M = OH * OW
    T = KH * KW
    K = Cin_g * T

    # ---- host-side glue: pad + im2col (stride handled here, not in-kernel) ----
    xpad = jnp.pad(x, ((0, 0), (0, 0), (padding, padding), (padding, padding)))
    taps = []
    for kh in range(KH):
        for kw in range(KW):
            taps.append(lax.slice(
                xpad, (0, 0, kh, kw),
                (N, Cin, kh + (OH - 1) * stride + 1, kw + (OW - 1) * stride + 1),
                (1, 1, stride, stride)))                       # [N, Cin, OH, OW]
    xcol = jnp.stack(taps, axis=2)                             # [N, Cin, T, OH, OW]
    xcol = xcol.reshape(N, G, Cin_g, T, M).reshape(N, G, K, M)  # K order: (ci, kh, kw)

    # Weight: [Cout, Cin_g, KH, KW] -> [G, Cout_g, K] with matching K ordering.
    w_mat = weight.reshape(G, Cout_g, Cin_g, T).reshape(G, Cout_g, K)

    # Pad the contraction dim to a multiple of 8 (sublane) with zeros — free for the dot.
    K_pad = ((K + 7) // 8) * 8
    if K_pad != K:
        xcol = jnp.pad(xcol, ((0, 0), (0, 0), (0, K_pad - K), (0, 0)))
        w_mat = jnp.pad(w_mat, ((0, 0), (0, 0), (0, K_pad - K)))

    b_g = bias.reshape(G, Cout_g, 1)
    gamma_g = gamma.reshape(G, Cout_g, 1)
    beta_g = beta.reshape(G, Cout_g, 1)

    # Spatial tile: full M when act_norm (single-pass stats need it) or when M is not
    # 128-aligned; otherwise a lane-dense tile that divides M.
    if act_norm or (M % 128 != 0):
        m_blk = M
    else:
        m_blk = min(M, 1024)
        while M % m_blk != 0:
            m_blk -= 128
    n_m = M // m_blk

    kernel = _make_kernel(act_norm, neg_slope, eps)

    out = pl.pallas_call(
        kernel,
        out_shape=jax.ShapeDtypeStruct((N, G, Cout_g, M), x.dtype),
        grid=(N, G, n_m),
        in_specs=[
            pl.BlockSpec((1, 1, K_pad, m_blk), lambda n, g, m: (n, g, 0, m)),
            pl.BlockSpec((1, Cout_g, K_pad), lambda n, g, m: (g, 0, 0)),
            pl.BlockSpec((1, Cout_g, 1), lambda n, g, m: (g, 0, 0)),
            pl.BlockSpec((1, Cout_g, 1), lambda n, g, m: (g, 0, 0)),
            pl.BlockSpec((1, Cout_g, 1), lambda n, g, m: (g, 0, 0)),
        ],
        out_specs=pl.BlockSpec((1, 1, Cout_g, m_blk), lambda n, g, m: (n, g, 0, m)),
        compiler_params=pltpu.CompilerParams(
            dimension_semantics=("parallel", "parallel", "parallel")),
    )(xcol, w_mat, b_g, gamma_g, beta_g)

    # [N, G, Cout_g, OH*OW] -> NCHW (pure reshape: no transpose / extra HBM pass).
    return out.reshape(N, Cout, OH, OW)


def _reference(x, weight, bias, gamma, beta, *, stride, padding, groups, act_norm,
               neg_slope=0.2, eps=1e-5):
    """Pure-JAX reference (matches PyTorch semantics) for validation."""
    if x.shape[1] % groups != 0:
        groups = 1
    y = lax.conv_general_dilated(
        x, weight, window_strides=(stride, stride),
        padding=[(padding, padding), (padding, padding)],
        dimension_numbers=("NCHW", "OIHW", "NCHW"),
        feature_group_count=groups)
    y = y + bias[None, :, None, None]
    if act_norm:
        N, C, H, W = y.shape
        yg = y.reshape(N, groups, C // groups, H, W)
        mean = yg.mean(axis=(2, 3, 4), keepdims=True)
        var = ((yg - mean) ** 2).mean(axis=(2, 3, 4), keepdims=True)
        yg = (yg - mean) / jnp.sqrt(var + eps)
        y = yg.reshape(N, C, H, W)
        y = y * gamma[None, :, None, None] + beta[None, :, None, None]
        y = jnp.where(y >= 0, y, neg_slope * y)
    return y


if __name__ == "__main__":
    # Small deterministic config consistent with the module.
    N, Cin, H, W = 2, 8, 16, 16
    Cout, ksize, stride, padding, groups = 8, 3, 1, 1, 2

    key = jax.random.PRNGKey(0)
    kx, kw, kb, kg, kbeta = jax.random.split(key, 5)

    x = jax.random.normal(kx, (N, Cin, H, W), jnp.float32)

    # Deterministic parameter init (kaiming-uniform-like for conv, like PyTorch defaults).
    fan_in = (Cin // groups) * ksize * ksize
    bound = 1.0 / math.sqrt(fan_in)
    weight = jax.random.uniform(kw, (Cout, Cin // groups, ksize, ksize),
                                jnp.float32, -bound, bound)
    bias = jax.random.uniform(kb, (Cout,), jnp.float32, -bound, bound)
    gamma = 1.0 + 0.1 * jax.random.normal(kg, (Cout,), jnp.float32)
    beta = 0.1 * jax.random.normal(kbeta, (Cout,), jnp.float32)

    @functools.partial(jax.jit, static_argnames=("kernel_size", "stride", "padding",
                                                 "groups", "act_norm"))
    def run(x, weight, bias, gamma, beta, kernel_size, stride, padding, groups, act_norm):
        return group_conv2d(x, weight, bias, gamma, beta, kernel_size=kernel_size,
                            stride=stride, padding=padding, groups=groups,
                            act_norm=act_norm)

    ok = True
    for act_norm in (False, True):
        out = jax.block_until_ready(
            run(x, weight, bias, gamma, beta, ksize, stride, padding, groups, act_norm))
        expected = _reference(x, weight, bias, gamma, beta, stride=stride, padding=padding,
                              groups=groups, act_norm=act_norm)
        if out.shape != expected.shape:
            ok = False
        elif not jnp.allclose(out, expected, atol=5e-4, rtol=5e-4):
            ok = False

    print("KERNEL_OK" if ok else "KERNEL_MISMATCH")
</pallas_src>

<mosaic_0001>
module attributes {stable_mosaic.version = 11 : i64} {
  func.func @kernel(%arg0: i32, %arg1: i32, %arg2: i32, %arg3: memref<1x1x40x256xf32, #tpu.memory_space<vmem>>, %arg4: memref<1x4x40xf32, #tpu.memory_space<vmem>>, %arg5: memref<1x4x1xf32, #tpu.memory_space<vmem>>, %arg6: memref<1x4x1xf32, #tpu.memory_space<vmem>>, %arg7: memref<1x4x1xf32, #tpu.memory_space<vmem>>, %arg8: memref<1x1x4x256xf32, #tpu.memory_space<vmem>>) attributes {dimension_semantics = [#tpu.dimension_semantics<parallel>, #tpu.dimension_semantics<parallel>, #tpu.dimension_semantics<parallel>], iteration_bounds = array<i64: 2, 2, 1>, scalar_prefetch = 0 : i64, scratch_operands = 0 : i64, tpu.core_type = #tpu.core_type<tc>, window_params = [{transform_indices = @transform_0, window_bounds = array<i64: 1, 1, 40, 256>}, {transform_indices = @transform_1, window_bounds = array<i64: 1, 4, 40>}, {transform_indices = @transform_2, window_bounds = array<i64: 1, 4, 1>}, {transform_indices = @transform_3, window_bounds = array<i64: 1, 4, 1>}, {transform_indices = @transform_4, window_bounds = array<i64: 1, 4, 1>}, {transform_indices = @transform_5, window_bounds = array<i64: 1, 1, 4, 256>}]} {
    %c0 = arith.constant 0 : index
    %c0_0 = arith.constant 0 : index
    %c0_1 = arith.constant 0 : index
    %c0_2 = arith.constant 0 : index
    %0 = vector.load %arg3[%c0, %c0_0, %c0_1, %c0_2] : memref<1x1x40x256xf32, #tpu.memory_space<vmem>>, vector<1x1x40x256xf32>
    %1 = vector.shape_cast %0 : vector<1x1x40x256xf32> to vector<40x256xf32>
    %c0_3 = arith.constant 0 : index
    %c0_4 = arith.constant 0 : index
    %c0_5 = arith.constant 0 : index
    %2 = vector.load %arg4[%c0_3, %c0_4, %c0_5] : memref<1x4x40xf32, #tpu.memory_space<vmem>>, vector<1x4x40xf32>
    %3 = vector.shape_cast %2 : vector<1x4x40xf32> to vector<4x40xf32>
    %cst = arith.constant dense<0.000000e+00> : vector<4x256xf32>
    %4 = tpu.matmul %3, %1, %cst {dimension_numbers = #tpu.dot_dimension_numbers<[1], [0], [0], [1], [0, 0, 1, 1], [], []>} : vector<4x40xf32>, vector<40x256xf32>, vector<4x256xf32> -> vector<4x256xf32>
    %c0_6 = arith.constant 0 : index
    %c0_7 = arith.constant 0 : index
    %c0_8 = arith.constant 0 : index
    %5 = vector.load %arg5[%c0_6, %c0_7, %c0_8] : memref<1x4x1xf32, #tpu.memory_space<vmem>>, vector<1x4x1xf32>
    %6 = vector.shape_cast %5 : vector<1x4x1xf32> to vector<4x1xf32>
    %7 = vector.broadcast %6 : vector<4x1xf32> to vector<4x256xf32>
    %8 = arith.addf %4, %7 : vector<4x256xf32>
    %c0_9 = arith.constant 0 : index
    %c0_10 = arith.constant 0 : index
    %c0_11 = arith.constant 0 : index
    %c0_12 = arith.constant 0 : index
    %9 = vector.load %arg8[%c0_9, %c0_10, %c0_11, %c0_12] : memref<1x1x4x256xf32, #tpu.memory_space<vmem>>, vector<1x1x4x256xf32>
    %10 = vector.shape_cast %9 : vector<1x1x4x256xf32> to vector<4x256xf32>
    %11 = vector.shape_cast %8 : vector<4x256xf32> to vector<1x1x4x256xf32>
    tpu.vector_store %arg8[%c0_9, %c0_10, %c0_11, %c0_12], %11 {strides = array<i32>} : memref<1x1x4x256xf32, #tpu.memory_space<vmem>>, vector<1x1x4x256xf32>,
    return
  }
  func.func @transform_0(%arg0: i32, %arg1: i32, %arg2: i32) -> (i32, i32, i32, i32) {
    %c0_i32 = arith.constant 0 : i32
    %c0_i32_0 = arith.constant 0 : i32
    return %arg0, %arg1, %c0_i32, %arg2 : i32, i32, i32, i32
  }
  func.func @transform_1(%arg0: i32, %arg1: i32, %arg2: i32) -> (i32, i32, i32) {
    %c0_i32 = arith.constant 0 : i32
    %c0_i32_0 = arith.constant 0 : i32
    %c0_i32_1 = arith.constant 0 : i32
    return %arg1, %c0_i32, %c0_i32_0 : i32, i32, i32
  }
  func.func @transform_2(%arg0: i32, %arg1: i32, %arg2: i32) -> (i32, i32, i32) {
    %c0_i32 = arith.constant 0 : i32
    %c0_i32_0 = arith.constant 0 : i32
    %c0_i32_1 = arith.constant 0 : i32
    return %arg1, %c0_i32, %c0_i32_0 : i32, i32, i32
  }
  func.func @transform_3(%arg0: i32, %arg1: i32, %arg2: i32) -> (i32, i32, i32) {
    %c0_i32 = arith.constant 0 : i32
    %c0_i32_0 = arith.constant 0 : i32
    %c0_i32_1 = arith.constant 0 : i32
    return %arg1, %c0_i32, %c0_i32_0 : i32, i32, i32
  }
  func.func @transform_4(%arg0: i32, %arg1: i32, %arg2: i32) -> (i32, i32, i32) {
    %c0_i32 = arith.constant 0 : i32
    %c0_i32_0 = arith.constant 0 : i32
    %c0_i32_1 = arith.constant 0 : i32
    return %arg1, %c0_i32, %c0_i32_0 : i32, i32, i32
  }
  func.func @transform_5(%arg0: i32, %arg1: i32, %arg2: i32) -> (i32, i32, i32, i32) {
    %c0_i32 = arith.constant 0 : i32
    %c0_i32_0 = arith.constant 0 : i32
    return %arg0, %arg1, %c0_i32, %arg2 : i32, i32, i32, i32
  }
}

</mosaic_0001>

<llo_original>
// kernel: run.1
$region0: #{run.1}
  #allocation0 [shape = 'u32[]', space=smem, size = 0x4, offset = 0x4, fixed_abs, tag = 'smem constant byte address 0x4 - core index']
  #allocation1 [shape = 'u32[144,128]{1,0:T(1,128)}', space=vmem, size = 0x12000, scoped, tag = 'internal scratch']
  %s0 = inlined_call_operand.vmem [shape: f32[2,2,40,256], index: 0, kind: input, shape index: {}]
  %s1 = inlined_call_operand.vmem [shape: f32[2,4,40], index: 1, kind: input, shape index: {}]
  %s2 = inlined_call_operand.vmem [shape: f32[2,4,1], index: 2, kind: input, shape index: {}]
  %s3 = inlined_call_operand.vmem [shape: f32[2,4,1], index: 3, kind: input, shape index: {}]
  %s4 = inlined_call_operand.vmem [shape: f32[2,4,1], index: 4, kind: input, shape index: {}]
  %s5 = inlined_call_operand.vmem [shape: f32[2,2,4,256], index: 5, kind: output, shape index: {}]
  %s6 = sld [smem:[#allocation0]]
  $region53: #{run.1} parent=0
    _
  %s8 = ssub.s32 1, %s6
  %s9 = scalar_select 0, %s8, %s6
  loop: start=0, step=1, limit=6
  $region2: #{run.1} parent=0 // loop_pre_header
    _
  $region3: #{run.1} parent=0 // loop_header
    %s11 = sphi 0, %s15
    %p12 = scmp.ge.s32.totalorder %s11, 6
    %s18 = sphi 0, %s37
    %s19 = sphi 0, %s33
    %s20 = sphi 0, %s29
    %s21 = sphi 0, %s18
    %s22 = sphi 0, %s19
    %s23 = sphi 0, %s20
    %s24 = sphi 0, %s21
    %s25 = sphi 0, %s22
    %s26 = sphi 0, %s23
    %s44 = sphi 0, %s46
    %s47 = sphi 0, %s44
    %s48 = sphi 0, %s47
    %s64 = sphi 0, %s48
    %s70 = sphi 0, %s72
    %s73 = sphi 0, %s70
    %s74 = sphi 0, %s73
    %s90 = sphi 0, %s74
    %s96 = sphi 0, %s98
    %s99 = sphi 0, %s96
    %s100 = sphi 0, %s99
    %s116 = sphi 0, %s100
    %s122 = sphi 0, %s124
    %s125 = sphi 0, %s122
    %s126 = sphi 0, %s125
    %s142 = sphi 0, %s126
    %s148 = sphi 0, %s150
    %s151 = sphi 0, %s148
    %s152 = sphi 0, %s151
    %s168 = sphi 0, %s152
    %s178 = sphi 0, %s180
    %s181 = sphi 0, %s178
    %s182 = sphi 0, %s181
    %s198 = sphi 0, %s182
  $region4: #{run.1} parent=0 // loop_header_branch
    %14 = sbr.rel (%p12) target = $region8
  $region5: #{run.1} parent=0 // loop_body
    %s16 = ssub.s32 %s11, 1
    %s17 = ssub.s32 %s11, 2
    %s27 = sadd.s32 1, %s20
    %p28 = scmp.ge.s32.totalorder %s27, 1
    %s29 = scalar_select %p28, 0, %s27
    %s30 = sadd.s32 1, %s19
    %s31 = scalar_select %p28, %s30, %s19
    %p32 = scmp.ge.s32.totalorder %s31, 2
    %s33 = scalar_select %p32, 0, %s31
    %s34 = sadd.s32 1, %s18
    %s35 = scalar_select %p32, %s34, %s18
    %p36 = scmp.ge.s32.totalorder %s35, 2
    %s37 = scalar_select %p36, 0, %s35
    %s38 = ssub.s32 %s18, %s37
    %s39 = ssub.s32 %s19, %s33
    %s40 = sor.u32 %s38, %s39
    %s41 = ssub.s32 %s20, %s29
    %s42 = sor.u32 %s40, %s41
    %p43 = scmp.eq.s32.totalorder %s42, 0
    %s45 = sadd.s32 %s44, 1
    %s46 = scalar_select %p43, %s44, %s45
    %p49 = pneg %p43
    %p50 = scmp.eq.s32.totalorder %s11, 3
    %p51 = por %p49, %p50
    %p52 = scmp.ne.s32.totalorder %s44, %s47
    %p53 = scmp.eq.s32.totalorder %s11, 0
    %p54 = por %p52, %p53
    %p55 = scmp.ne.s32.totalorder %s44, %s47
    %p56 = scmp.eq.s32.totalorder %s16, 3
    %p57 = por %p55, %p56
    %p58 = scmp.ne.s32.totalorder %s47, %s48
    %p59 = scmp.eq.s32.totalorder %s16, 0
    %p60 = por %p58, %p59
    %p61 = scmp.ne.s32.totalorder %s47, %s48
    %p62 = scmp.eq.s32.totalorder %s17, 3
    %p63 = por %p61, %p62
    %p65 = scmp.ne.s32.totalorder %s48, %s64
    %p66 = scmp.eq.s32.totalorder %s17, 0
    %p67 = por %p65, %p66
    %s68 = ssub.s32 %s19, %s33
    %p69 = scmp.eq.s32.totalorder %s68, 0
    %s71 = sadd.s32 %s70, 1
    %s72 = scalar_select %p69, %s70, %s71
    %p75 = pneg %p69
    %p76 = scmp.eq.s32.totalorder %s11, 3
    %p77 = por %p75, %p76
    %p78 = scmp.ne.s32.totalorder %s70, %s73
    %p79 = scmp.eq.s32.totalorder %s11, 0
    %p80 = por %p78, %p79
    %p81 = scmp.ne.s32.totalorder %s70, %s73
    %p82 = scmp.eq.s32.totalorder %s16, 3
    %p83 = por %p81, %p82
    %p84 = scmp.ne.s32.totalorder %s73, %s74
    %p85 = scmp.eq.s32.totalorder %s16, 0
    %p86 = por %p84, %p85
    %p87 = scmp.ne.s32.totalorder %s73, %s74
    %p88 = scmp.eq.s32.totalorder %s17, 3
    %p89 = por %p87, %p88
    %p91 = scmp.ne.s32.totalorder %s74, %s90
    %p92 = scmp.eq.s32.totalorder %s17, 0
    %p93 = por %p91, %p92
    %s94 = ssub.s32 %s19, %s33
    %p95 = scmp.eq.s32.totalorder %s94, 0
    %s97 = sadd.s32 %s96, 1
    %s98 = scalar_select %p95, %s96, %s97
    %p101 = pneg %p95
    %p102 = scmp.eq.s32.totalorder %s11, 3
    %p103 = por %p101, %p102
    %p104 = scmp.ne.s32.totalorder %s96, %s99
    %p105 = scmp.eq.s32.totalorder %s11, 0
    %p106 = por %p104, %p105
    %p107 = scmp.ne.s32.totalorder %s96, %s99
    %p108 = scmp.eq.s32.totalorder %s16, 3
    %p109 = por %p107, %p108
    %p110 = scmp.ne.s32.totalorder %s99, %s100
    %p111 = scmp.eq.s32.totalorder %s16, 0
    %p112 = por %p110, %p111
    %p113 = scmp.ne.s32.totalorder %s99, %s100
    %p114 = scmp.eq.s32.totalorder %s17, 3
    %p115 = por %p113, %p114
    %p117 = scmp.ne.s32.totalorder %s100, %s116
    %p118 = scmp.eq.s32.totalorder %s17, 0
    %p119 = por %p117, %p118
    %s120 = ssub.s32 %s19, %s33
    %p121 = scmp.eq.s32.totalorder %s120, 0
    %s123 = sadd.s32 %s122, 1
    %s124 = scalar_select %p121, %s122, %s123
    %p127 = pneg %p121
    %p128 = scmp.eq.s32.totalorder %s11, 3
    %p129 = por %p127, %p128
    %p130 = scmp.ne.s32.totalorder %s122, %s125
    %p131 = scmp.eq.s32.totalorder %s11, 0
    %p132 = por %p130, %p131
    %p133 = scmp.ne.s32.totalorder %s122, %s125
    %p134 = scmp.eq.s32.totalorder %s16, 3
    %p135 = por %p133, %p134
    %p136 = scmp.ne.s32.totalorder %s125, %s126
    %p137 = scmp.eq.s32.totalorder %s16, 0
    %p138 = por %p136, %p137
    %p139 = scmp.ne.s32.totalorder %s125, %s126
    %p140 = scmp.eq.s32.totalorder %s17, 3
    %p141 = por %p139, %p140
    %p143 = scmp.ne.s32.totalorder %s126, %s142
    %p144 = scmp.eq.s32.totalorder %s17, 0
    %p145 = por %p143, %p144
    %s146 = ssub.s32 %s19, %s33
    %p147 = scmp.eq.s32.totalorder %s146, 0
    %s149 = sadd.s32 %s148, 1
    %s150 = scalar_select %p147, %s148, %s149
    %p153 = pneg %p147
    %p154 = scmp.eq.s32.totalorder %s11, 3
    %p155 = por %p153, %p154
    %p156 = scmp.ne.s32.totalorder %s148, %s151
    %p157 = scmp.eq.s32.totalorder %s11, 0
    %p158 = por %p156, %p157
    %p159 = scmp.ne.s32.totalorder %s148, %s151
    %p160 = scmp.eq.s32.totalorder %s16, 3
    %p161 = por %p159, %p160
    %p162 = scmp.ne.s32.totalorder %s151, %s152
    %p163 = scmp.eq.s32.totalorder %s16, 0
    %p164 = por %p162, %p163
    %p165 = scmp.ne.s32.totalorder %s151, %s152
    %p166 = scmp.eq.s32.totalorder %s17, 3
    %p167 = por %p165, %p166
    %p169 = scmp.ne.s32.totalorder %s152, %s168
    %p170 = scmp.eq.s32.totalorder %s17, 0
    %p171 = por %p169, %p170
    %s172 = ssub.s32 %s18, %s37
    %s173 = ssub.s32 %s19, %s33
    %s174 = sor.u32 %s172, %s173
    %s175 = ssub.s32 %s20, %s29
    %s176 = sor.u32 %s174, %s175
    %p177 = scmp.eq.s32.totalorder %s176, 0
    %s179 = sadd.s32 %s178, 1
    %s180 = scalar_select %p177, %s178, %s179
    %p183 = pneg %p177
    %p184 = scmp.eq.s32.totalorder %s11, 3
    %p185 = por %p183, %p184
    %p186 = scmp.ne.s32.totalorder %s178, %s181
    %p187 = scmp.eq.s32.totalorder %s11, 0
    %p188 = por %p186, %p187
    %p189 = scmp.ne.s32.totalorder %s178, %s181
    %p190 = scmp.eq.s32.totalorder %s16, 3
    %p191 = por %p189, %p190
    %p192 = scmp.ne.s32.totalorder %s181, %s182
    %p193 = scmp.eq.s32.totalorder %s16, 0
    %p194 = por %p192, %p193
    %p195 = scmp.ne.s32.totalorder %s181, %s182
    %p196 = scmp.eq.s32.totalorder %s17, 3
    %p197 = por %p195, %p196
    %p199 = scmp.ne.s32.totalorder %s182, %s198
    %p200 = scmp.eq.s32.totalorder %s17, 0
    %p201 = por %p199, %p200
    %p202 = scmp.le.s32.totalorder 1, %s11
    %p203 = scmp.lt.s32.totalorder %s11, 5
    %p204 = pnand %p202, %p203
    %p205 = pneg %p204
    // Predicated region
    $region9: #{run.1} parent=5 // pred_check
      _
    $region10: #{run.1} parent=5 // pred_check_branch
      %207 = sbr.rel (%p204) target = $region12
    $region11: #{run.1} parent=5 // pred_region
      %s208 = ssub.s32 %s11, 1
    $region12: #{run.1} parent=5 // pred_fallthru
      _
    %p209 = scmp.lt.s32.totalorder %s11, 4
    // Predicated region
    $region13: #{run.1} parent=5 // pred_check
      %p210 = pneg %p209
    $region14: #{run.1} parent=5 // pred_check_branch
      %212 = sbr.rel (%p210) target = $region16
    $region15: #{run.1} parent=5 // pred_region
      // Predicated region
      $region17: #{run.1} parent=15 // pred_check
        %p213 = pneg %p54
      $region18: #{run.1} parent=15 // pred_check_branch
        %215 = sbr.rel (%p213) target = $region20
      $region19: #{run.1} parent=15 // pred_region
        %s216 = smul.u32 2, %s20
        %p217 = scmp.lt.s32.totalorder %s18, 1
        %s218 = scalar_select %p217, %s18, 1
        %p219 = scmp.lt.s32.totalorder %s19, 1
        %s220 = scalar_select %p219, %s19, 1
        %p221 = scmp.lt.s32.totalorder %s216, 1
        %s222 = scalar_select %p221, %s216, 1
        %s223 = smul.addr %s220, 10
        %s224 = sadd.s32 %s222, %s223
        %s225 = smul.addr %s218, 20
        %s226 = sadd.s32 %s224, %s225
        %s227 = smul.addr %s226, 8
        %s228 = scalar_lea.vmem %s0, %s227
        %s229 = smul.u32 2, %s20
      $region20: #{run.1} parent=15 // pred_fallthru
        _
      // Predicated region
      $region21: #{run.1} parent=15 // pred_check
        %p230 = pneg %p80
      $region22: #{run.1} parent=15 // pred_check_branch
        %232 = sbr.rel (%p230) target = $region24
      $region23: #{run.1} parent=15 // pred_region
        %p233 = scmp.lt.s32.totalorder %s19, 1
        %s234 = scalar_select %p233, %s19, 1
        %s235 = smul.addr %s234, 4
        %s236 = scalar_lea.vmem %s1, %s235
      $region24: #{run.1} parent=15 // pred_fallthru
        _
      // Predicated region
      $region25: #{run.1} parent=15 // pred_check
        %p237 = pneg %p106
      $region26: #{run.1} parent=15 // pred_check_branch
        %239 = sbr.rel (%p237) target = $region28
      $region27: #{run.1} parent=15 // pred_region
        %p240 = scmp.lt.s32.totalorder %s19, 1
        %s241 = scalar_select %p240, %s19, 1
        %s242 = smul.addr %s241, 4
        %s243 = scalar_lea.vmem %s2, %s242
      $region28: #{run.1} parent=15 // pred_fallthru
        _
      // Predicated region
      $region29: #{run.1} parent=15 // pred_check
        %p244 = pneg %p132
      $region30: #{run.1} parent=15 // pred_check_branch
        %246 = sbr.rel (%p244) target = $region32
      $region31: #{run.1} parent=15 // pred_region
        %p247 = scmp.lt.s32.totalorder %s19, 1
        %s248 = scalar_select %p247, %s19, 1
        %s249 = smul.addr %s248, 4
        %s250 = scalar_lea.vmem %s3, %s249
      $region32: #{run.1} parent=15 // pred_fallthru
        _
      // Predicated region
      $region33: #{run.1} parent=15 // pred_check
        %p251 = pneg %p158
      $region34: #{run.1} parent=15 // pred_check_branch
        %253 = sbr.rel (%p251) target = $region36
      $region35: #{run.1} parent=15 // pred_region
        %p254 = scmp.lt.s32.totalorder %s19, 1
        %s255 = scalar_select %p254, %s19, 1
        %s256 = smul.addr %s255, 4
        %s257 = scalar_lea.vmem %s4, %s256
      $region36: #{run.1} parent=15 // pred_fallthru
        _
    $region16: #{run.1} parent=5 // pred_fallthru
      _
    %p258 = scmp.le.s32.totalorder 1, %s11
    %p259 = scmp.lt.s32.totalorder %s11, 5
    %p260 = pnand %p258, %p259
    %p261 = pneg %p260
    // Predicated region
    $region37: #{run.1} parent=5 // pred_check
      _
    $region38: #{run.1} parent=5 // pred_check_branch
      %263 = sbr.rel (%p260) target = $region40
    $region39: #{run.1} parent=5 // pred_region
      %s264 = ssub.s32 %s11, 1
      %s265 = smul.u32 2, %s23
      %p266 = scmp.lt.s32.totalorder %s21, 1
      %s267 = scalar_select %p266, %s21, 1
      %p268 = scmp.lt.s32.totalorder %s22, 1
      %s269 = scalar_select %p268, %s22, 1
      %p270 = scmp.lt.s32.totalorder %s265, 1
      %s271 = scalar_select %p270, %s265, 1
      %s272 = smul.addr %s269, 10
      %s273 = sadd.s32 %s271, %s272
      %s274 = smul.addr %s267, 20
      %s275 = sadd.s32 %s273, %s274
      %s276 = smul.addr %s275, 8
      %s277 = scalar_lea.vmem %s0, %s276
      %p278 = pneg %p60
      %p279 = pneg %p57
      %p280 = scmp.lt.s32.totalorder %s22, 1
      %s281 = scalar_select %p280, %s22, 1
      %s282 = smul.addr %s281, 4
      %s283 = scalar_lea.vmem %s1, %s282
      %p284 = pneg %p86
      %p285 = pneg %p83
      %p286 = scmp.lt.s32.totalorder %s22, 1
      %s287 = scalar_select %p286, %s22, 1
      %s288 = smul.addr %s287, 4
      %s289 = scalar_lea.vmem %s2, %s288
      %p290 = pneg %p112
      %p291 = pneg %p109
      %p292 = scmp.lt.s32.totalorder %s22, 1
      %s293 = scalar_select %p292, %s22, 1
      %s294 = smul.addr %s293, 4
      %s295 = scalar_lea.vmem %s3, %s294
      %p296 = pneg %p138
      %p297 = pneg %p135
      %p298 = scmp.lt.s32.totalorder %s22, 1
      %s299 = scalar_select %p298, %s22, 1
      %s300 = smul.addr %s299, 4
      %s301 = scalar_lea.vmem %s4, %s300
      %p302 = pneg %p164
      %p303 = pneg %p161
      %p304 = pneg %p194
      %p305 = pneg %p191
      %s306 = smul.u32 2, %s23
      %p307 = scmp.lt.s32.totalorder %s21, 1
      %s308 = scalar_select %p307, %s21, 1
      %p309 = scmp.lt.s32.totalorder %s22, 1
      %s310 = scalar_select %p309, %s22, 1
      %p311 = scmp.lt.s32.totalorder %s306, 1
      %s312 = scalar_select %p311, %s306, 1
      %s313 = smul.addr %s310, 2
      %s314 = sadd.s32 %s312, %s313
      %s315 = smul.addr %s308, 4
      %s316 = sadd.s32 %s314, %s315
      %s317 = smul.addr %s316, 4
      %s318 = scalar_lea.vmem %s5, %s317
      %s319 = smul.u32 2, %s23
      %p320 = scmp.lt.s32.totalorder %s21, 1
      %s321 = scalar_select %p320, %s21, 1
      %p322 = scmp.lt.s32.totalorder %s22, 1
      %s323 = scalar_select %p322, %s22, 1
      %p324 = scmp.lt.s32.totalorder %s319, 1
      %s325 = scalar_select %p324, %s319, 1
      %s326 = smul.addr %s323, 10
      %s327 = sadd.s32 %s325, %s326
      %s328 = smul.addr %s321, 20
      %s329 = sadd.s32 %s327, %s328
      %s330 = smul.addr %s329, 8
      %s331 = scalar_lea.vmem %s0, %s330
      %s332 = smul.u32 2, %s23
      %p333 = scmp.lt.s32.totalorder %s22, 1
      %s334 = scalar_select %p333, %s22, 1
      %s335 = smul.addr %s334, 4
      %s336 = scalar_lea.vmem %s1, %s335
      %p337 = scmp.lt.s32.totalorder %s22, 1
      %s338 = scalar_select %p337, %s22, 1
      %s339 = smul.addr %s338, 4
      %s340 = scalar_lea.vmem %s2, %s339
      %p341 = scmp.lt.s32.totalorder %s22, 1
      %s342 = scalar_select %p341, %s22, 1
      %s343 = smul.addr %s342, 4
      %s344 = scalar_lea.vmem %s3, %s343
      %p345 = scmp.lt.s32.totalorder %s22, 1
      %s346 = scalar_select %p345, %s22, 1
      %s347 = smul.addr %s346, 4
      %s348 = scalar_lea.vmem %s4, %s347
      %s349 = smul.u32 2, %s23
      %p350 = scmp.lt.s32.totalorder %s21, 1
      %s351 = scalar_select %p350, %s21, 1
      %p352 = scmp.lt.s32.totalorder %s22, 1
      %s353 = scalar_select %p352, %s22, 1
      %p354 = scmp.lt.s32.totalorder %s349, 1
      %s355 = scalar_select %p354, %s349, 1
      %s356 = smul.addr %s353, 2
      %s357 = sadd.s32 %s355, %s356
      %s358 = smul.addr %s351, 4
      %s359 = sadd.s32 %s357, %s358
      %s360 = smul.addr %s359, 4
      %s361 = scalar_lea.vmem %s5, %s360
      %s362 = smul.u32 2, %s23
      %v363 = vld [vmem:[%s331] sm:$0xff]
      %v364 = vld [vmem:[%s331 + $0x8] sm:$0xff]
      %v365 = vld [vmem:[%s331 + $0x10] sm:$0xff]
      %v366 = vld [vmem:[%s331 + $0x18] sm:$0xff]
      %v367 = vld [vmem:[%s331 + $0x20] sm:$0xff]
      %v368 = vld [vmem:[%s331 + $0x28] sm:$0xff]
      %v369 = vld [vmem:[%s331 + $0x30] sm:$0xff]
      %v370 = vld [vmem:[%s331 + $0x38] sm:$0xff]
      %v371 = vld [vmem:[%s331 + $0x40] sm:$0xff]
      %v372 = vld [vmem:[%s331 + $0x48] sm:$0xff]
      %v373 = vld [vmem:[%s336] sm:$0xf]
      %v374 = vld [vmem:[%s340] sm:$0xf]
      %376 = vset.pattern.permute.xlu0 0
      %377 = vperm.xlu0 %376, %v374
      %v378 = vpop.permute.xlu0 %377
      %vm380 = vcmask 326656
      %v382 = vsel %vm380, %v373, 0
      %384 = vmatprep.subr.mxu0 0.0
      %385 = vmatpush1.msra.mxu0 0.0
      %386 = vmatprep.subr.mxu0 0.0
      %387 = vmatpush1.msra.mxu0 0.0
      %388 = vmatprep.subr.mxu0 0.0
      %389 = vmatpush1.msra.mxu0 0.0
      %390 = vmatprep.subr.mxu0 0.0
      %391 = vmatpush1.msra.mxu0 0.0
      %392 = vmatprep.subr.mxu0 0.0
      %393 = vmatpush1.msra.mxu0 0.0
      %394 = vmatprep.subr.mxu0 0.0
      %395 = vmatpush1.msra.mxu0 0.0
      %396 = vmatprep.subr.mxu0 0.0
      %397 = vmatpush1.msra.mxu0 0.0
      %398 = vmatprep.subr.mxu0 0.0
      %399 = vmatpush1.msra.mxu0 0.0
      %400 = vmatprep.subr.mxu0 0.0
      %401 = vmatpush1.msra.mxu0 0.0
      %402 = vmatprep.subr.mxu0 0.0
      %403 = vmatpush1.msra.mxu0 0.0
      %404 = vmatprep.subr.mxu0 0.0
      %405 = vmatpush1.msra.mxu0 0.0
      %406 = vmatprep.subr.mxu0 %v372
      %407 = vmatpush1.msra.mxu0 %v371
      %408 = vmatprep.subr.mxu0 %v370
      %409 = vmatpush1.msra.mxu0 %v369
      %410 = vmatprep.subr.mxu0 %v368
      %411 = vmatpush1.msra.mxu0 %v367
      %412 = vmatprep.subr.mxu0 %v366
      %413 = vmatpush1.msra.mxu0 %v365
      %414 = vmatprep.subr.mxu0 %v364
      %415 = vmatpush1.msra.mxu0 %v363
      %416 = vmatprep.subr.mxu0 0.0
      %417 = vmatpush2.msra.mxu0 0.0
      %418 = vmatprep.subr.mxu0 0.0
      %419 = vmatpush2.msra.mxu0 0.0
      %420 = vmatprep.subr.mxu0 0.0
      %421 = vmatpush2.msra.mxu0 0.0
      %422 = vmatprep.subr.mxu0 0.0
      %423 = vmatpush2.msra.mxu0 0.0
      %424 = vmatprep.subr.mxu0 0.0
      %425 = vmatpush2.msra.mxu0 0.0
      %426 = vmatprep.subr.mxu0 0.0
      %427 = vmatpush2.msra.mxu0 0.0
      %428 = vmatprep.subr.mxu0 0.0
      %429 = vmatpush2.msra.mxu0 0.0
      %430 = vmatprep.subr.mxu0 0.0
      %431 = vmatpush2.msra.mxu0 0.0
      %432 = vmatprep.subr.mxu0 0.0
      %433 = vmatpush2.msra.mxu0 0.0
      %434 = vmatprep.subr.mxu0 0.0
      %435 = vmatpush2.msra.mxu0 0.0
      %436 = vmatprep.subr.mxu0 0.0
      %437 = vmatpush2.msra.mxu0 0.0
      %438 = vmatprep.subr.mxu0 0.0
      %439 = vmatpush2.msra.mxu0 0.0
      %440 = vmatprep.subr.mxu0 0.0
      %441 = vmatpush2.msra.mxu0 0.0
      %442 = vmatprep.subr.mxu0 0.0
      %443 = vmatpush2.msra.mxu0 0.0
      %444 = vmatprep.subr.mxu0 0.0
      %445 = vmatpush2.msra.mxu0 0.0
      %446 = vmatprep.subr.mxu0 0.0
      %447 = vmatpush2.msra.mxu0 0.0
      %448 = vmatprep.mubr.f32.mxu0 0.0
      %449 = vmatmul.mubr.f32.gmra.mxu0 %v382
      %v450 = vpop.f32.mrf.mxu0
      %v451 = vadd.f32 %v378, %v450
      %v452 = vpop.f32.mrf.mxu0
      %v453 = vadd.f32 %v378, %v452
      %454 = vdwg.mxu0
      %v457 = vcombine.low %v451, %v453
      %459 = vst [vmem:[%s361] sm:$0xff] %v457
      %s460 = smul.u32 2, %s23
      %p461 = scmp.lt.s32.totalorder %s21, 1
      %s462 = scalar_select %p461, %s21, 1
      %p463 = scmp.lt.s32.totalorder %s22, 1
      %s464 = scalar_select %p463, %s22, 1
      %p465 = scmp.lt.s32.totalorder %s460, 1
      %s466 = scalar_select %p465, %s460, 1
      %s467 = smul.addr %s464, 2
      %s468 = sadd.s32 %s466, %s467
      %s469 = smul.addr %s462, 4
      %s470 = sadd.s32 %s468, %s469
      %s471 = smul.addr %s470, 4
      %s472 = scalar_lea.vmem %s5, %s471
      // Predicated region
      $region41: #{run.1} parent=39 // pred_check
        %p473 = pneg %p191
      $region42: #{run.1} parent=39 // pred_check_branch
        %475 = sbr.rel (%p473) target = $region44
      $region43: #{run.1} parent=39 // pred_region
        %s476 = smul.u32 2, %s23
      $region44: #{run.1} parent=39 // pred_fallthru
        _
    $region40: #{run.1} parent=5 // pred_fallthru
      _
    %p477 = scmp.le.s32.totalorder 2, %s11
    // Predicated region
    $region45: #{run.1} parent=5 // pred_check
      %p478 = pneg %p477
    $region46: #{run.1} parent=5 // pred_check_branch
      %480 = sbr.rel (%p478) target = $region48
    $region47: #{run.1} parent=5 // pred_region
      %s481 = ssub.s32 %s11, 2
      // Predicated region
      $region49: #{run.1} parent=47 // pred_check
        %p482 = pneg %p197
      $region50: #{run.1} parent=47 // pred_check_branch
        %484 = sbr.rel (%p482) target = $region52
      $region51: #{run.1} parent=47 // pred_region
        %s485 = smul.u32 2, %s26
        %p486 = scmp.lt.s32.totalorder %s24, 1
        %s487 = scalar_select %p486, %s24, 1
        %p488 = scmp.lt.s32.totalorder %s25, 1
        %s489 = scalar_select %p488, %s25, 1
        %p490 = scmp.lt.s32.totalorder %s485, 1
        %s491 = scalar_select %p490, %s485, 1
        %s492 = smul.addr %s489, 2
        %s493 = sadd.s32 %s491, %s492
        %s494 = smul.addr %s487, 4
        %s495 = sadd.s32 %s493, %s494
        %s496 = smul.addr %s495, 4
        %s497 = scalar_lea.vmem %s5, %s496
      $region52: #{run.1} parent=47 // pred_fallthru
        _
    $region48: #{run.1} parent=5 // pred_fallthru
      _
  $region6: #{run.1} parent=0 // loop_footer
    %s15 = sadd.s32 1, %s11
  $region7: #{run.1} parent=0 // loop_footer_branch
    %10 = sbr.rel target = $region3
  $region8: #{run.1} parent=0 // loop_exit
    _

</llo_original>
